<compile_context>
chip_gen: v7x
topology: tpu7x:2x2x1
jax: 0.10.0
libtpu: 0.0.40
codegen_flags: <defaults>
</compile_context>

<pallas_src>
import jax
import jax.numpy as jnp
from jax import lax
from jax.experimental import pallas as pl
from jax.experimental.pallas import tpu as pltpu

_SUBLANE = 8


def _round_up(n, m):
    return ((n + m - 1) // m) * m


def _pad_axis(a, axis, size):
    pad = size - a.shape[axis]
    if pad <= 0:
        return a
    widths = [(0, 0)] * a.ndim
    widths[axis] = (0, pad)
    return jnp.pad(a, widths)


# ----------------------------------------------------------------------------
# shared row-tiled projection kernel:  out = x @ w + b   (one-time passes)
# ----------------------------------------------------------------------------
def _proj_kernel(x_ref, w_ref, b_ref, o_ref):
    o_ref[...] = (jnp.dot(x_ref[...], w_ref[...],
                          preferred_element_type=jnp.float32)
                  + b_ref[...]).astype(o_ref.dtype)


def _tiled_proj(x2d, w, b, out_dtype, block_rows=256):
    rows, K = x2d.shape
    N = w.shape[1]
    rows8 = _round_up(rows, _SUBLANE)
    blk = min(block_rows, rows8)
    rows_p = _round_up(rows8, blk)
    x_p = _pad_axis(x2d, 0, rows_p)
    out = pl.pallas_call(
        _proj_kernel,
        out_shape=jax.ShapeDtypeStruct((rows_p, N), out_dtype),
        grid=(rows_p // blk,),
        in_specs=[pl.BlockSpec((blk, K), lambda i: (i, 0)),
                  pl.BlockSpec((K, N), lambda i: (0, 0)),
                  pl.BlockSpec((1, N), lambda i: (0, 0))],
        out_specs=pl.BlockSpec((blk, N), lambda i: (i, 0)),
        compiler_params=pltpu.CompilerParams(
            dimension_semantics=("parallel",)),
    )(x_p, w, b)
    return out[:rows]


# ----------------------------------------------------------------------------
# one-time key-projection cache  (mirrors GRUAttnCell.compute_cache)
# ----------------------------------------------------------------------------
def compute_cache(context, params):
    """context:[B,T,C] -> keys:[B,T,A] in f32 (elementwise-path dtype)."""
    B, T, C = context.shape
    A = params["wk_t"].shape[1]
    cdt = params["wk_t"].dtype
    mem2d = context.reshape(B * T, C).astype(cdt)
    zero_b = jnp.zeros((1, A), jnp.float32)
    keys2d = _tiled_proj(mem2d, params["wk_t"], zero_b, jnp.float32)
    return keys2d.reshape(B, T, A)


# ----------------------------------------------------------------------------
# recurrent step kernel: grid=(batch_tiles, S), h carried in VMEM scratch
# ----------------------------------------------------------------------------
def _gru_attn_step_kernel(gi_ref, h0_ref, whh_ref, bhh_ref, wq_ref, v_ref,
                          keys_ref, mem_ref, amask_ref, out_ref, h_scr):
    s = pl.program_id(1)
    H = h0_ref.shape[-1]
    mxu_dtype = whh_ref.dtype

    @pl.when(s == 0)
    def _():
        h_scr[...] = h0_ref[...]

    h = h_scr[...]                                    # [TB, H] f32
    gi = gi_ref[0]                                    # [TB, 3H] f32 (x@Wih + bih)

    # ---- GRU (torch.nn.GRUCell, gate order r,z,n); only h-path MXU per step --
    gh = jnp.dot(h.astype(mxu_dtype), whh_ref[...],
                 preferred_element_type=jnp.float32) + bhh_ref[...]   # [TB, 3H]
    r = jax.nn.sigmoid(gi[:, 0:H] + gh[:, 0:H])
    z = jax.nn.sigmoid(gi[:, H:2 * H] + gh[:, H:2 * H])
    n = jnp.tanh(gi[:, 2 * H:3 * H] + r * gh[:, 2 * H:3 * H])
    h_new = (1.0 - z) * n + z * h                     # [TB, H] f32

    # ---- Bahdanau additive attention (keys precomputed, f32 resident) ----
    q = jnp.dot(h_new.astype(mxu_dtype), wq_ref[...],
                preferred_element_type=jnp.float32)   # [TB, A]
    e = jnp.tanh(q[:, None, :] + keys_ref[...])       # [TB, T, A]
    # VPU multiply + lane reduce (avoid N=1 MXU matmul)
    scores = jnp.sum(e * v_ref[...], axis=-1)         # [TB, T]
    scores = scores + amask_ref[...]                  # additive 0/-1e30 mask
    scores = scores - jnp.max(scores, axis=-1, keepdims=True)
    p = jnp.exp(scores)
    denom = jnp.sum(p, axis=-1, keepdims=True)
    recip = pl.reciprocal(denom, approx=True)
    recip = recip * (2.0 - denom * recip)             # one Newton refinement
    alphas = p * recip                                # [TB, T]

    # VPU multiply + sublane reduce (avoid M=1 MXU matvec)
    ctx = jnp.sum(alphas[:, :, None] * mem_ref[...], axis=1)   # [TB, C]

    h_scr[...] = h_new
    # packed lane-denser output slab: [:, :H] = h, [:, H:] = ctx
    out_ref[0, :, :H] = h_new.astype(out_ref.dtype)
    out_ref[0, :, H:] = ctx.astype(out_ref.dtype)


# ----------------------------------------------------------------------------
# wrappers
# ----------------------------------------------------------------------------
def prepare_params(raw, compute_dtype=jnp.float32):
    """Cast parameters.  compute_dtype only affects MXU weight operands
    (use jnp.bfloat16 on v6e/v7x); all elementwise math stays f32.

    raw: wih_t:[I,3H], whh_t:[H,3H], bih:[1,3H], bhh:[1,3H],
         wq_t:[H,A], wk_t:[C,A], v:[1,A]
    """
    return {
        "wih_t": raw["wih_t"].astype(compute_dtype),
        "bih":   raw["bih"].astype(jnp.float32),
        "whh_t": raw["whh_t"].astype(compute_dtype),
        "bhh":   raw["bhh"].astype(jnp.float32),
        "wq_t":  raw["wq_t"].astype(compute_dtype),
        "wk_t":  raw["wk_t"].astype(compute_dtype),
        "v":     raw["v"].astype(jnp.float32),
    }


def gru_attn_sequence(x_seq, h0, context, context_mask, params, cache=None,
                      batch_tile=None):
    """Apply the GRU+attention cell over a sequence inside one kernel.

    x_seq:[S,B,I], h0:[B,H], context:[B,T,C], context_mask:[B,T].
    Returns ((h_seq:[S,B,H], ctx_seq:[S,B,C]), h_last:[B,H]).
    """
    S, B, I = x_seq.shape
    H = h0.shape[1]
    _, T, C = context.shape
    cdt = params["whh_t"].dtype
    A = params["wq_t"].shape[1]
    HC = H + C

    sub = 16 if cdt == jnp.bfloat16 else _SUBLANE     # bf16 packs 16 sublanes
    Bp0 = _round_up(B, sub)
    TB = batch_tile if batch_tile is not None else min(Bp0, 128)
    TB = _round_up(TB, sub)
    Bp = _round_up(Bp0, TB)
    nb = Bp // TB

    if cache is None:
        cache = compute_cache(context, params)        # [B, T, A] f32

    x_p = _pad_axis(x_seq, 1, Bp)
    h0_p = _pad_axis(h0, 0, Bp).astype(jnp.float32)
    mem_p = _pad_axis(context, 0, Bp).astype(jnp.float32)
    amask = jnp.where(context_mask > 0.5, 0.0, -1e30).astype(jnp.float32)
    amask_p = _pad_axis(amask, 0, Bp)
    keys_p = _pad_axis(cache.astype(jnp.float32), 0, Bp)

    # one-shot input projection of the whole sequence (big parallel matmul)
    gi2d = _tiled_proj(x_p.reshape(S * Bp, I).astype(cdt),
                       params["wih_t"], params["bih"], jnp.float32)
    gi_seq = gi2d.reshape(S, Bp, 3 * H)

    # conservative VMEM footprint estimate (double-buffered) + headroom
    f32b = 4
    cb = jnp.dtype(cdt).itemsize
    blocks = (TB * 3 * H * f32b + TB * H * f32b + H * 3 * H * cb
              + 3 * H * f32b + H * A * cb + A * f32b
              + TB * T * A * f32b + TB * T * C * f32b + TB * T * f32b
              + TB * HC * f32b)
    vmem_limit = int(min(100 << 20, max(32 << 20,
                                        2 * blocks + TB * H * f32b + (2 << 20))))

    out_p = pl.pallas_call(
        _gru_attn_step_kernel,
        out_shape=jax.ShapeDtypeStruct((S, Bp, HC), jnp.float32),
        grid=(nb, S),
        in_specs=[
            pl.BlockSpec((1, TB, 3 * H), lambda b, s: (s, b, 0)),   # gi (per step)
            pl.BlockSpec((TB, H), lambda b, s: (b, 0)),             # h0
            pl.BlockSpec((H, 3 * H), lambda b, s: (0, 0)),          # W_hh^T
            pl.BlockSpec((1, 3 * H), lambda b, s: (0, 0)),          # b_hh
            pl.BlockSpec((H, A), lambda b, s: (0, 0)),              # W_q^T
            pl.BlockSpec((1, A), lambda b, s: (0, 0)),              # v
            pl.BlockSpec((TB, T, A), lambda b, s: (b, 0, 0)),       # keys (f32)
            pl.BlockSpec((TB, T, C), lambda b, s: (b, 0, 0)),       # memory (f32)
            pl.BlockSpec((TB, T), lambda b, s: (b, 0)),             # additive mask
        ],
        out_specs=pl.BlockSpec((1, TB, HC), lambda b, s: (s, b, 0)),
        scratch_shapes=[pltpu.VMEM((TB, H), jnp.float32)],          # carried h
        compiler_params=pltpu.CompilerParams(
            dimension_semantics=("parallel", "arbitrary"),
            vmem_limit_bytes=vmem_limit),
    )(gi_seq, h0_p, params["whh_t"], params["bhh"],
      params["wq_t"], params["v"], keys_p, mem_p, amask_p)

    h_seq = out_p[:, :B, :H]
    ctx_seq = out_p[:, :B, H:]
    return (h_seq, ctx_seq), h_seq[-1]


def gru_attn_cell(x, hidden, context, context_mask, params, cache=None):
    """Single step; mirrors GRUAttnCell.forward -> ((hidden, attn_values), hidden)."""
    (h_seq, ctx_seq), _ = gru_attn_sequence(
        x[None], hidden, context, context_mask, params, cache=cache)
    return (h_seq[0], ctx_seq[0]), h_seq[0]


# ----------------------------------------------------------------------------
# pure-JAX reference
# ----------------------------------------------------------------------------
def _reference_sequence(x_seq, h0, context, context_mask, raw):
    H = h0.shape[1]
    keys = jnp.einsum('btc,ca->bta', context, raw["wk_t"])

    def step(h, x):
        gi = x @ raw["wih_t"] + raw["bih"]
        gh = h @ raw["whh_t"] + raw["bhh"]
        r = jax.nn.sigmoid(gi[:, :H] + gh[:, :H])
        z = jax.nn.sigmoid(gi[:, H:2 * H] + gh[:, H:2 * H])
        n = jnp.tanh(gi[:, 2 * H:] + r * gh[:, 2 * H:])
        h_new = (1.0 - z) * n + z * h
        q = h_new @ raw["wq_t"]
        scores = jnp.einsum('bta,a->bt', jnp.tanh(q[:, None, :] + keys),
                            raw["v"][0])
        scores = jnp.where(context_mask > 0.5, scores, -1e30)
        alphas = jax.nn.softmax(scores, axis=-1)
        ctx = jnp.einsum('bt,btc->bc', alphas, context)
        return h_new, (h_new, ctx)

    h_last, (h_seq, ctx_seq) = lax.scan(step, h0, x_seq)
    return h_seq, ctx_seq, h_last


if __name__ == "__main__":
    B, I, H, C, T, S = 2, 32, 32, 32, 8, 6   # batch, input, hidden, ctx feat, mem len, steps
    A = H                                    # attention dim = hidden_size (query_size)

    key = jax.random.PRNGKey(0)
    ks = jax.random.split(key, 12)
    scale = 1.0 / jnp.sqrt(H)

    raw = {
        "wih_t": jax.random.uniform(ks[0], (I, 3 * H), jnp.float32, -scale, scale),
        "whh_t": jax.random.uniform(ks[1], (H, 3 * H), jnp.float32, -scale, scale),
        "bih":   jax.random.uniform(ks[2], (1, 3 * H), jnp.float32, -scale, scale),
        "bhh":   jax.random.uniform(ks[3], (1, 3 * H), jnp.float32, -scale, scale),
        "wq_t":  jax.random.uniform(ks[4], (H, A), jnp.float32, -scale, scale),
        "wk_t":  jax.random.uniform(ks[5], (C, A), jnp.float32, -scale, scale),
        "v":     jax.random.uniform(ks[6], (1, A), jnp.float32, -scale, scale),
    }

    x_seq = jax.random.normal(ks[7], (S, B, I), jnp.float32)
    hidden = jax.random.normal(ks[8], (B, H), jnp.float32)
    context = jax.random.normal(ks[9], (B, T, C), jnp.float32)
    context_mask = jnp.concatenate(
        [jnp.ones((1, T), jnp.float32),
         jnp.concatenate([jnp.ones((1, T - 3), jnp.float32),
                          jnp.zeros((1, 3), jnp.float32)], axis=1)], axis=0)

    ref_h_seq, ref_ctx_seq, ref_h_last = _reference_sequence(
        x_seq, hidden, context, context_mask, raw)

    # ---- f32 compute dtype ----
    params = prepare_params(raw, jnp.float32)
    cache = compute_cache(context, params)
    (h_seq, ctx_seq), h_last = gru_attn_sequence(
        x_seq, hidden, context, context_mask, params, cache=cache)
    jax.block_until_ready((h_seq, ctx_seq, h_last))

    assert jnp.allclose(h_seq, ref_h_seq, atol=1e-4, rtol=1e-4)
    assert jnp.allclose(h_last, ref_h_last, atol=1e-4, rtol=1e-4)
    # Newton-refined reciprocal -> near-f32 softmax normalization
    assert jnp.allclose(ctx_seq, ref_ctx_seq, atol=5e-4, rtol=5e-4)

    # single-step API mirrors the torch forward
    (h1, ctx1), h1_out = gru_attn_cell(
        x_seq[0], hidden, context, context_mask, params, cache=cache)
    jax.block_until_ready((h1, ctx1, h1_out))
    assert jnp.allclose(h1, ref_h_seq[0], atol=1e-4, rtol=1e-4)
    assert jnp.allclose(ctx1, ref_ctx_seq[0], atol=5e-4, rtol=5e-4)
    assert jnp.allclose(h1_out, h1)

    # ---- bf16 MXU weight operands (recommended on v6e / v7x), f32 elementwise ----
    params_bf16 = prepare_params(raw, jnp.bfloat16)
    (h_seq_bf, ctx_seq_bf), _ = gru_attn_sequence(
        x_seq, hidden, context, context_mask, params_bf16)
    jax.block_until_ready((h_seq_bf, ctx_seq_bf))
    assert jnp.allclose(h_seq_bf, ref_h_seq, atol=1e-1, rtol=1e-1)
    assert jnp.allclose(ctx_seq_bf, ref_ctx_seq, atol=1e-1, rtol=1e-1)

    print("KERNEL_OK")
</pallas_src>

<mosaic_0001>
module attributes {stable_mosaic.version = 11 : i64} {
  func.func @_proj_kernel(%arg0: i32, %arg1: memref<16x32xf32, #tpu.memory_space<vmem>>, %arg2: memref<32x32xf32, #tpu.memory_space<vmem>>, %arg3: memref<1x32xf32, #tpu.memory_space<vmem>>, %arg4: memref<16x32xf32, #tpu.memory_space<vmem>>) attributes {dimension_semantics = [#tpu.dimension_semantics<parallel>], iteration_bounds = array<i64: 1>, scalar_prefetch = 0 : i64, scratch_operands = 0 : i64, tpu.core_type = #tpu.core_type<tc>, window_params = [{transform_indices = @transform_0, window_bounds = array<i64: 16, 32>}, {pipeline_mode = #tpu.pipeline_mode<synchronous>, transform_indices = @transform_1, window_bounds = array<i64: 32, 32>}, {pipeline_mode = #tpu.pipeline_mode<synchronous>, transform_indices = @transform_2, window_bounds = array<i64: 1, 32>}, {transform_indices = @transform_3, window_bounds = array<i64: 16, 32>}]} {
    %c0 = arith.constant 0 : index
    %c0_0 = arith.constant 0 : index
    %0 = vector.load %arg1[%c0, %c0_0] : memref<16x32xf32, #tpu.memory_space<vmem>>, vector<16x32xf32>
    %c0_1 = arith.constant 0 : index
    %c0_2 = arith.constant 0 : index
    %1 = vector.load %arg2[%c0_1, %c0_2] : memref<32x32xf32, #tpu.memory_space<vmem>>, vector<32x32xf32>
    %cst = arith.constant dense<0.000000e+00> : vector<16x32xf32>
    %2 = tpu.matmul %0, %1, %cst {dimension_numbers = #tpu.dot_dimension_numbers<[1], [0], [0], [1], [0, 0, 1, 1], [], []>} : vector<16x32xf32>, vector<32x32xf32>, vector<16x32xf32> -> vector<16x32xf32>
    %c0_3 = arith.constant 0 : index
    %c0_4 = arith.constant 0 : index
    %3 = vector.load %arg3[%c0_3, %c0_4] : memref<1x32xf32, #tpu.memory_space<vmem>>, vector<1x32xf32>
    %4 = vector.broadcast %3 : vector<1x32xf32> to vector<16x32xf32>
    %5 = arith.addf %2, %4 : vector<16x32xf32>
    %c0_5 = arith.constant 0 : index
    %c0_6 = arith.constant 0 : index
    %6 = vector.load %arg4[%c0_5, %c0_6] : memref<16x32xf32, #tpu.memory_space<vmem>>, vector<16x32xf32>
    tpu.vector_store %arg4[%c0_5, %c0_6], %5 {strides = array<i32>} : memref<16x32xf32, #tpu.memory_space<vmem>>, vector<16x32xf32>,
    return
  }
  func.func @transform_0(%arg0: i32) -> (i32, i32) {
    %c0_i32 = arith.constant 0 : i32
    %c0_i32_0 = arith.constant 0 : i32
    return %arg0, %c0_i32 : i32, i32
  }
  func.func @transform_1(%arg0: i32) -> (i32, i32) {
    %c0_i32 = arith.constant 0 : i32
    %c0_i32_0 = arith.constant 0 : i32
    %c0_i32_1 = arith.constant 0 : i32
    return %c0_i32, %c0_i32_0 : i32, i32
  }
  func.func @transform_2(%arg0: i32) -> (i32, i32) {
    %c0_i32 = arith.constant 0 : i32
    %c0_i32_0 = arith.constant 0 : i32
    %c0_i32_1 = arith.constant 0 : i32
    return %c0_i32, %c0_i32_0 : i32, i32
  }
  func.func @transform_3(%arg0: i32) -> (i32, i32) {
    %c0_i32 = arith.constant 0 : i32
    %c0_i32_0 = arith.constant 0 : i32
    return %arg0, %c0_i32 : i32, i32
  }
}

</mosaic_0001>

<llo_original>
// kernel: tpu_custom_call.1
$region0: #{tpu_custom_call.1}
  #allocation0 [shape = 'u32[]', space=smem, size = 0x4, offset = 0x4, fixed_abs, tag = 'smem constant byte address 0x4 - core index']
  #allocation1 [shape = 'u32[144,128]{1,0:T(1,128)}', space=vmem, size = 0x12000, scoped, tag = 'internal scratch']
  %s0 = inlined_call_operand.hbm [shape: f32[16,32], index: 0, kind: input, shape index: {}]
  %s1 = inlined_call_operand.hbm [shape: f32[32,32], index: 1, kind: input, shape index: {}]
  %s2 = inlined_call_operand.vmem [shape: f32[1,32], index: 2, kind: input, shape index: {}]
  %s3 = inlined_call_operand.hbm [shape: f32[16,32], index: 3, kind: output, shape index: {}]
  %s4 = sld [smem:[#allocation0]]
  $region30: #{tpu_custom_call.1} parent=0
    _
  %s6 = ssub.s32 1, %s4
  %s7 = scalar_select 0, %s6, %s4
  $region1: #{tpu_custom_call.1} parent=0
    #allocation2 [shape = 'u8[8192]{0}', space=vmem, size = 0x2000, scoped, tag = 'input window, operand 0, single buffered']
    #allocation3 [shape = 's32[1]{0}', space=sflag, size = 0x4, scoped, tag = 'scoped memory for tpu_custom_call.1']
    #allocation4 [shape = 's32[1]{0}', space=sflag, size = 0x4, scoped, tag = 'scoped memory for tpu_custom_call.1']
    #allocation5 [shape = 'u8[16384]{0}', space=vmem, size = 0x4000, scoped, tag = 'input window, operand 1, single buffered']
    #allocation6 [shape = 's32[1]{0}', space=sflag, size = 0x4, scoped, tag = 'scoped memory for tpu_custom_call.1']
    #allocation7 [shape = 'u8[8192]{0}', space=vmem, size = 0x2000, scoped, tag = 'output window, operand 0, single buffered']
    %8 = vsyncpa [#allocation3], 0
    %9 = vsyncpa [#allocation6], 0
    %10 = vsyncpa [#allocation4], 0
    // Predicated region
    $region2: #{tpu_custom_call.1} parent=1 // pred_check
      _
    $region3: #{tpu_custom_call.1} parent=1 // pred_check_branch
      %12 = sbr.rel (0) target = $region5
    $region4: #{tpu_custom_call.1} parent=1 // pred_region
      %s14 = ssub.s32 256, 256
      %15 = vsyncadd [#allocation3], %s14
      %s16 = sshll.u32 [#allocation2], 4
      %s17 = int_to_ptr.vmem [resolvable:$true] %s16
      %22 = dma.hbm_to_vmem [thread:$0]  %s0, 256, %s17, [#allocation3], 128, 128, 8
    $region5: #{tpu_custom_call.1} parent=1 // pred_fallthru
      _
    // Predicated region
    $region6: #{tpu_custom_call.1} parent=1 // pred_check
      _
    $region7: #{tpu_custom_call.1} parent=1 // pred_check_branch
      %24 = sbr.rel (0) target = $region9
    $region8: #{tpu_custom_call.1} parent=1 // pred_region
      %s26 = ssub.s32 512, 512
      %27 = vsyncadd [#allocation6], %s26
      %s28 = sshll.u32 [#allocation5], 4
      %s29 = int_to_ptr.vmem [resolvable:$true] %s28
      %34 = dma.hbm_to_vmem [thread:$0]  %s1, 512, %s29, [#allocation6], 128, 128, 8
    $region9: #{tpu_custom_call.1} parent=1 // pred_fallthru
      _
    // Predicated region
    $region10: #{tpu_custom_call.1} parent=1 // pred_check
      _
    $region11: #{tpu_custom_call.1} parent=1 // pred_check_branch
      %36 = sbr.rel (0) target = $region13
    $region12: #{tpu_custom_call.1} parent=1 // pred_region
      _
    $region13: #{tpu_custom_call.1} parent=1 // pred_fallthru
      _
    // Predicated region
    $region14: #{tpu_custom_call.1} parent=1 // pred_check
      _
    $region15: #{tpu_custom_call.1} parent=1 // pred_check_branch
      %38 = sbr.rel (0) target = $region17
    $region16: #{tpu_custom_call.1} parent=1 // pred_region
      %39 = dma.done [#allocation3], 256
    $region17: #{tpu_custom_call.1} parent=1 // pred_fallthru
      _
    // Predicated region
    $region18: #{tpu_custom_call.1} parent=1 // pred_check
      _
    $region19: #{tpu_custom_call.1} parent=1 // pred_check_branch
      %41 = sbr.rel (0) target = $region21
    $region20: #{tpu_custom_call.1} parent=1 // pred_region
      %42 = dma.done [#allocation6], 512
    $region21: #{tpu_custom_call.1} parent=1 // pred_fallthru
      _
    %v43 = vld [vmem:[#allocation2] sm:$0xff]
    %v44 = vld [vmem:[#allocation2 + $0x8] sm:$0xff]
    %v45 = vld [vmem:[#allocation5] sm:$0xff]
    %v46 = vld [vmem:[#allocation5 + $0x8] sm:$0xff]
    %v47 = vld [vmem:[#allocation5 + $0x10] sm:$0xff]
    %v48 = vld [vmem:[#allocation5 + $0x18] sm:$0xff]
    %v49 = vld [vmem:[%s2] sm:$0x1]
    %v51 = vlaneseq
    %v52 = vshrl.u32 %v51, 7
    %v53 = vsub.s32 0, %v52
    %v54 = vrot.slane %v49, %v53
    %vm56 = vcmask 261120
    %v58 = vsel %vm56, %v43, 0
    %v61 = vsel %vm56, %v44, 0
    %63 = vmatprep.subr.mxu0 0.0
    %64 = vmatpush1.msra.mxu0 %v45
    %65 = vmatprep.subr.mxu0 0.0
    %66 = vmatpush1.msra.mxu0 %v46
    %67 = vmatprep.subr.mxu0 0.0
    %68 = vmatpush1.msra.mxu0 %v47
    %69 = vmatprep.subr.mxu0 0.0
    %70 = vmatpush1.msra.mxu0 %v48
    %71 = vmatprep.subr.mxu0 0.0
    %72 = vmatpush1.msra.mxu0 0.0
    %73 = vmatprep.subr.mxu0 0.0
    %74 = vmatpush1.msra.mxu0 0.0
    %75 = vmatprep.subr.mxu0 0.0
    %76 = vmatpush1.msra.mxu0 0.0
    %77 = vmatprep.subr.mxu0 0.0
    %78 = vmatpush1.msra.mxu0 0.0
    %79 = vmatprep.subr.mxu0 0.0
    %80 = vmatpush1.msra.mxu0 0.0
    %81 = vmatprep.subr.mxu0 0.0
    %82 = vmatpush1.msra.mxu0 0.0
    %83 = vmatprep.subr.mxu0 0.0
    %84 = vmatpush1.msra.mxu0 0.0
    %85 = vmatprep.subr.mxu0 0.0
    %86 = vmatpush1.msra.mxu0 0.0
    %87 = vmatprep.subr.mxu0 0.0
    %88 = vmatpush1.msra.mxu0 0.0
    %89 = vmatprep.subr.mxu0 0.0
    %90 = vmatpush1.msra.mxu0 0.0
    %91 = vmatprep.subr.mxu0 0.0
    %92 = vmatpush1.msra.mxu0 0.0
    %93 = vmatprep.subr.mxu0 0.0
    %94 = vmatpush1.msra.mxu0 0.0
    %95 = vmatprep.subr.mxu0 0.0
    %96 = vmatpush1.msra.mxu0 0.0
    %97 = vmatprep.subr.mxu0 0.0
    %98 = vmatpush1.msra.mxu0 0.0
    %99 = vmatprep.subr.mxu0 0.0
    %100 = vmatpush1.msra.mxu0 0.0
    %101 = vmatprep.subr.mxu0 0.0
    %102 = vmatpush1.msra.mxu0 0.0
    %103 = vmatprep.subr.mxu0 0.0
    %104 = vmatpush1.msra.mxu0 0.0
    %105 = vmatprep.subr.mxu0 0.0
    %106 = vmatpush1.msra.mxu0 0.0
    %107 = vmatprep.subr.mxu0 0.0
    %108 = vmatpush1.msra.mxu0 0.0
    %109 = vmatprep.subr.mxu0 0.0
    %110 = vmatpush1.msra.mxu0 0.0
    %111 = vmatprep.subr.mxu0 0.0
    %112 = vmatpush1.msra.mxu0 0.0
    %113 = vmatprep.subr.mxu0 0.0
    %114 = vmatpush1.msra.mxu0 0.0
    %115 = vmatprep.subr.mxu0 0.0
    %116 = vmatpush1.msra.mxu0 0.0
    %117 = vmatprep.subr.mxu0 0.0
    %118 = vmatpush1.msra.mxu0 0.0
    %119 = vmatprep.subr.mxu0 0.0
    %120 = vmatpush1.msra.mxu0 0.0
    %121 = vmatprep.subr.mxu0 0.0
    %122 = vmatpush1.msra.mxu0 0.0
    %123 = vmatprep.subr.mxu0 0.0
    %124 = vmatpush1.msra.mxu0 0.0
    %125 = vmatprep.subr.mxu0 0.0
    %126 = vmatpush1.msra.mxu0 0.0
    %127 = vmatprep.mubr.f32.mxu0 0.0
    %128 = vmatmul.mubr.f32.gmra.mrb[0].mxu0 %v58
    %v129 = vpop.f32.mrb[0].mxu0
    %v130 = vadd.f32 %v54, %v129
    %v131 = vpop.f32.mrb[0].mxu0
    %132 = vmatprep.mubr.f32.mxu0 0.0
    %133 = vmatmul.mubr.f32.gmra.mrb[0].mxu0 %v61
    %v134 = vpop.f32.mrb[0].mxu0
    %v135 = vadd.f32 %v54, %v134
    %v136 = vpop.f32.mrb[0].mxu0
    %137 = vdwg.mxu0
    %138 = vst.msk [vmem:[#allocation7] sm:$0xff] %vm56, %v130
    %139 = vst.msk [vmem:[#allocation7 + $0x8] sm:$0xff] %vm56, %v135
    // Predicated region
    $region22: #{tpu_custom_call.1} parent=1 // pred_check
      _
    $region23: #{tpu_custom_call.1} parent=1 // pred_check_branch
      %141 = sbr.rel (0) target = $region25
    $region24: #{tpu_custom_call.1} parent=1 // pred_region
      %s143 = ssub.s32 256, 256
      %144 = vsyncadd [#allocation4], %s143
      %s145 = sshll.u32 [#allocation7], 4
      %s146 = int_to_ptr.vmem [resolvable:$true] %s145
      %151 = dma.vmem_to_hbm [thread:$0]  %s146, 256, %s3, [#allocation4], 128, 128, 8
    $region25: #{tpu_custom_call.1} parent=1 // pred_fallthru
      _
    // Predicated region
    $region26: #{tpu_custom_call.1} parent=1 // pred_check
      _
    $region27: #{tpu_custom_call.1} parent=1 // pred_check_branch
      %153 = sbr.rel (0) target = $region29
    $region28: #{tpu_custom_call.1} parent=1 // pred_region
      %154 = dma.done [#allocation4], 256
    $region29: #{tpu_custom_call.1} parent=1 // pred_fallthru
      _
    %155 = vsyncpa [#allocation3], 1
    %156 = vsyncpa [#allocation6], 1
    %157 = vsyncpa [#allocation4], 1

</llo_original>
